<compile_context>
chip_gen: v7x
topology: tpu7x:2x2x1
jax: 0.10.0
libtpu: 0.0.40
codegen_flags: <defaults>
</compile_context>

<pallas_src>
import functools

import jax
import jax.numpy as jnp
from jax.experimental import pallas as pl
from jax.experimental.pallas import tpu as pltpu


def _round_up(a: int, b: int) -> int:
    return (a + b - 1) // b * b


def _make_focal_kernel(alpha: float, gamma: float, ignore_index: int):
    alpha = float(alpha)
    gamma = float(gamma)

    def kernel(x_ref, t_ref, acc_ref):
        p = pl.program_id(1)

        @pl.when(p == 0)
        def _():
            acc_ref[...] = jnp.zeros_like(acc_ref)

        x = x_ref[...].astype(jnp.float32)            # (C, T) logits
        t = t_ref[...]                                # (1, T) int32 targets

        # numerically stable log-softmax denominator (reduce over class axis)
        m = jnp.max(x, axis=0, keepdims=True)         # (1, T)
        lse = m + jnp.log(jnp.sum(jnp.exp(x - m), axis=0, keepdims=True))

        # gather the target-class logit via iota compare (no dynamic gather)
        cls = jax.lax.broadcasted_iota(jnp.int32, x.shape, 0)
        tgt_logit = jnp.sum(jnp.where(cls == t, x, 0.0), axis=0, keepdims=True)

        valid = t != ignore_index
        ce = jnp.where(valid, lse - tgt_logit, 0.0)   # (1, T), >= 0

        # focal weighting, specialised on the static gamma
        if gamma == 0.0:
            # (1 - pt)**0 == 1 (PyTorch pow(0,0)==1), so focal = alpha * ce.
            focal = alpha * ce
        else:
            pt = jnp.exp(-ce)
            omp = jnp.maximum(1.0 - pt, 0.0)          # clamp tiny negatives
            if gamma.is_integer() and 0.0 < gamma <= 8.0:
                w = omp
                for _ in range(int(gamma) - 1):       # cheap VPU multiplies
                    w = w * omp
            else:
                # guarded pow: avoid exp(gamma*log(0)) edge cases
                w = jnp.where(omp > 0.0, jnp.power(omp, gamma), 0.0)
            focal = alpha * w * ce

        acc_ref[...] += jnp.where(valid, focal, 0.0)

    return kernel


@functools.partial(
    jax.jit,
    static_argnames=("alpha", "gamma", "size_average", "ignore_index",
                     "block_pixels"),
)
def deeplab_v3_focal_loss(
    inputs,            # (N, C, H, W) float logits (NCHW, like PyTorch)
    targets,           # (N, H, W) integer class indices (may contain ignore_index)
    *,
    alpha: float = 1.0,
    gamma: float = 0.0,
    size_average: bool = True,
    ignore_index: int = 255,
    block_pixels: int = 8192,
):
    N, C, H, W = inputs.shape
    P = H * W

    # NCHW-native: (N, C, P) is a free reshape; pixels go on the lane axis.
    x = inputs.reshape(N, C, P)
    if x.dtype not in (jnp.float32, jnp.bfloat16):
        x = x.astype(jnp.float32)
    t = targets.reshape(N, 1, P).astype(jnp.int32)

    block_pixels = max(128, _round_up(int(block_pixels), 128))
    t_pix = min(block_pixels, _round_up(P, 128))
    P_pad = _round_up(P, t_pix)
    if P_pad != P:
        pad = P_pad - P
        x = jnp.pad(x, ((0, 0), (0, 0), (0, pad)))
        # padded pixels get ignore_index -> contribute exactly 0
        t = jnp.pad(t, ((0, 0), (0, 0), (0, pad)), constant_values=ignore_index)

    grid = (N, P_pad // t_pix)
    kernel = _make_focal_kernel(alpha, gamma, int(ignore_index))

    partials = pl.pallas_call(
        kernel,
        out_shape=jax.ShapeDtypeStruct((N, 1, t_pix), jnp.float32),
        grid_spec=pltpu.PrefetchScalarGridSpec(
            num_scalar_prefetch=0,
            grid=grid,
            in_specs=[
                pl.BlockSpec((None, C, t_pix), lambda n, p: (n, 0, p)),
                pl.BlockSpec((None, 1, t_pix), lambda n, p: (n, 0, p)),
            ],
            out_specs=pl.BlockSpec((None, 1, t_pix), lambda n, p: (n, 0, 0)),
        ),
        compiler_params=pltpu.CompilerParams(
            dimension_semantics=("parallel", "arbitrary"),
        ),
    )(x, t)

    total = jnp.sum(partials)   # tiny (N * t_pix) reduce done by XLA
    if size_average:
        # PyTorch .mean() divides by ALL pixels, including ignored ones.
        return total / jnp.float32(N * H * W)
    return total


def _reference_focal_loss(inputs, targets, alpha=1.0, gamma=0.0,
                          size_average=True, ignore_index=255):
    """Pure-JAX reference mirroring the PyTorch module."""
    N, C, H, W = inputs.shape
    x = jnp.transpose(inputs, (0, 2, 3, 1)).reshape(-1, C).astype(jnp.float32)
    t = targets.reshape(-1)
    logp = jax.nn.log_softmax(x, axis=-1)
    valid = t != ignore_index
    t_safe = jnp.where(valid, t, 0)
    ce = -jnp.take_along_axis(logp, t_safe[:, None], axis=-1)[:, 0]
    ce = jnp.where(valid, ce, 0.0)
    pt = jnp.exp(-ce)
    focal = alpha * (1.0 - pt) ** gamma * ce
    return focal.mean() if size_average else focal.sum()


if __name__ == "__main__":
    key = jax.random.PRNGKey(0)
    k_logits, k_tgt, k_ign, k2 = jax.random.split(key, 4)

    # Test 1: module defaults (alpha=1, gamma=0, mean, ignore_index=255).
    N, C, H, W = 2, 4, 16, 16
    logits = jax.random.normal(k_logits, (N, C, H, W), dtype=jnp.float32)
    targets = jax.random.randint(k_tgt, (N, H, W), 0, C, dtype=jnp.int32)
    ignore_mask = jax.random.bernoulli(k_ign, 0.1, (N, H, W))
    targets = jnp.where(ignore_mask, 255, targets)

    loss = jax.block_until_ready(
        deeplab_v3_focal_loss(logits, targets, alpha=1.0, gamma=0.0,
                              size_average=True, ignore_index=255))
    ref = _reference_focal_loss(logits, targets, alpha=1.0, gamma=0.0,
                                size_average=True, ignore_index=255)
    assert jnp.allclose(loss, ref, rtol=1e-5, atol=1e-6), (loss, ref)

    # Test 2: integer gamma>0, sum reduction (exercises repeated-multiply path).
    loss2 = jax.block_until_ready(
        deeplab_v3_focal_loss(logits, targets, alpha=0.25, gamma=2.0,
                              size_average=False, ignore_index=255))
    ref2 = _reference_focal_loss(logits, targets, alpha=0.25, gamma=2.0,
                                 size_average=False, ignore_index=255)
    assert jnp.allclose(loss2, ref2, rtol=1e-5, atol=1e-5), (loss2, ref2)

    # Test 3: non-divisible spatial size (exercises padding) + non-integer gamma.
    N3, C3, H3, W3 = 2, 6, 13, 13
    kl3, kt3, ki3 = jax.random.split(k2, 3)
    logits3 = jax.random.normal(kl3, (N3, C3, H3, W3), dtype=jnp.float32)
    targets3 = jax.random.randint(kt3, (N3, H3, W3), 0, C3, dtype=jnp.int32)
    targets3 = jnp.where(jax.random.bernoulli(ki3, 0.15, (N3, H3, W3)),
                         255, targets3)
    loss3 = jax.block_until_ready(
        deeplab_v3_focal_loss(logits3, targets3, alpha=0.5, gamma=2.5,
                              size_average=True, ignore_index=255))
    ref3 = _reference_focal_loss(logits3, targets3, alpha=0.5, gamma=2.5,
                                 size_average=True, ignore_index=255)
    assert jnp.allclose(loss3, ref3, rtol=1e-5, atol=1e-6), (loss3, ref3)

    print("KERNEL_OK")
</pallas_src>

<mosaic_0001>
module attributes {stable_mosaic.version = 11 : i64} {
  func.func @kernel(%arg0: i32, %arg1: i32, %arg2: memref<1x4x256xf32, #tpu.memory_space<vmem>>, %arg3: memref<1x1x256xi32, #tpu.memory_space<vmem>>, %arg4: memref<1x1x256xf32, #tpu.memory_space<vmem>>) attributes {dimension_semantics = [#tpu.dimension_semantics<parallel>, #tpu.dimension_semantics<arbitrary>], iteration_bounds = array<i64: 2, 1>, scalar_prefetch = 0 : i64, scratch_operands = 0 : i64, tpu.core_type = #tpu.core_type<tc>, window_params = [{transform_indices = @transform_0, window_bounds = array<i64: 1, 4, 256>}, {transform_indices = @transform_1, window_bounds = array<i64: 1, 1, 256>}, {transform_indices = @transform_2, window_bounds = array<i64: 1, 1, 256>}]} {
    %c0_i32 = arith.constant 0 : i32
    %0 = arith.cmpi eq, %arg1, %c0_i32 : i32
    %1 = arith.extui %0 : i1 to i32
    %c0_i32_0 = arith.constant 0 : i32
    %2 = arith.cmpi ne, %1, %c0_i32_0 : i32
    scf.if %2 {
      %cst_18 = arith.constant 0.000000e+00 : f32
      %38 = vector.broadcast %cst_18 : f32 to vector<1x256xf32>
      %c0_19 = arith.constant 0 : index
      %c0_20 = arith.constant 0 : index
      %c0_21 = arith.constant 0 : index
      %39 = vector.load %arg4[%c0_19, %c0_20, %c0_21] : memref<1x1x256xf32, #tpu.memory_space<vmem>>, vector<1x1x256xf32>
      %40 = vector.shape_cast %39 : vector<1x1x256xf32> to vector<1x256xf32>
      %41 = vector.shape_cast %38 : vector<1x256xf32> to vector<1x1x256xf32>
      tpu.vector_store %arg4[%c0_19, %c0_20, %c0_21], %41 {strides = array<i32>} : memref<1x1x256xf32, #tpu.memory_space<vmem>>, vector<1x1x256xf32>,
    } else {
    }
    %c0 = arith.constant 0 : index
    %c0_1 = arith.constant 0 : index
    %c0_2 = arith.constant 0 : index
    %3 = vector.load %arg2[%c0, %c0_1, %c0_2] : memref<1x4x256xf32, #tpu.memory_space<vmem>>, vector<1x4x256xf32>
    %4 = vector.shape_cast %3 : vector<1x4x256xf32> to vector<4x256xf32>
    %c0_3 = arith.constant 0 : index
    %c0_4 = arith.constant 0 : index
    %c0_5 = arith.constant 0 : index
    %5 = vector.load %arg3[%c0_3, %c0_4, %c0_5] : memref<1x1x256xi32, #tpu.memory_space<vmem>>, vector<1x1x256xi32>
    %6 = vector.shape_cast %5 : vector<1x1x256xi32> to vector<1x256xi32>
    %cst = arith.constant dense<0xFF800000> : vector<256xf32>
    %7 = vector.multi_reduction <maximumf>, %4, %cst [0] : vector<4x256xf32> to vector<256xf32>
    %8 = vector.shape_cast %7 : vector<256xf32> to vector<1x256xf32>
    %9 = vector.broadcast %8 : vector<1x256xf32> to vector<4x256xf32>
    %10 = arith.subf %4, %9 : vector<4x256xf32>
    %11 = math.exp %10 : vector<4x256xf32>
    %cst_6 = arith.constant dense<0.000000e+00> : vector<256xf32>
    %12 = vector.multi_reduction <add>, %11, %cst_6 [0] : vector<4x256xf32> to vector<256xf32>
    %13 = vector.shape_cast %12 : vector<256xf32> to vector<1x256xf32>
    %14 = math.log %13 : vector<1x256xf32>
    %15 = arith.addf %8, %14 : vector<1x256xf32>
    %16 = tpu.iota {dimensions = array<i32: 0>} : vector<4x256xi32>
    %17 = vector.broadcast %6 : vector<1x256xi32> to vector<4x256xi32>
    %18 = arith.cmpi eq, %16, %17 : vector<4x256xi32>
    %cst_7 = arith.constant 0.000000e+00 : f32
    %19 = vector.broadcast %cst_7 : f32 to vector<4x256xf32>
    %20 = arith.select %18, %4, %19 : vector<4x256xi1>, vector<4x256xf32>
    %cst_8 = arith.constant dense<0.000000e+00> : vector<256xf32>
    %21 = vector.multi_reduction <add>, %20, %cst_8 [0] : vector<4x256xf32> to vector<256xf32>
    %22 = vector.shape_cast %21 : vector<256xf32> to vector<1x256xf32>
    %c255_i32 = arith.constant 255 : i32
    %23 = vector.broadcast %c255_i32 : i32 to vector<1x256xi32>
    %24 = arith.cmpi ne, %6, %23 : vector<1x256xi32>
    %25 = arith.subf %15, %22 : vector<1x256xf32>
    %cst_9 = arith.constant 0.000000e+00 : f32
    %26 = vector.broadcast %cst_9 : f32 to vector<1x256xf32>
    %27 = arith.select %24, %25, %26 : vector<1x256xi1>, vector<1x256xf32>
    %cst_10 = arith.constant 1.000000e+00 : f32
    %28 = vector.broadcast %cst_10 : f32 to vector<1x256xf32>
    %29 = arith.mulf %28, %27 : vector<1x256xf32>
    %c0_11 = arith.constant 0 : index
    %c0_12 = arith.constant 0 : index
    %c0_13 = arith.constant 0 : index
    %30 = vector.load %arg4[%c0_11, %c0_12, %c0_13] : memref<1x1x256xf32, #tpu.memory_space<vmem>>, vector<1x1x256xf32>
    %31 = vector.shape_cast %30 : vector<1x1x256xf32> to vector<1x256xf32>
    %cst_14 = arith.constant 0.000000e+00 : f32
    %32 = vector.broadcast %cst_14 : f32 to vector<1x256xf32>
    %33 = arith.select %24, %29, %32 : vector<1x256xi1>, vector<1x256xf32>
    %34 = arith.addf %31, %33 : vector<1x256xf32>
    %c0_15 = arith.constant 0 : index
    %c0_16 = arith.constant 0 : index
    %c0_17 = arith.constant 0 : index
    %35 = vector.load %arg4[%c0_15, %c0_16, %c0_17] : memref<1x1x256xf32, #tpu.memory_space<vmem>>, vector<1x1x256xf32>
    %36 = vector.shape_cast %35 : vector<1x1x256xf32> to vector<1x256xf32>
    %37 = vector.shape_cast %34 : vector<1x256xf32> to vector<1x1x256xf32>
    tpu.vector_store %arg4[%c0_15, %c0_16, %c0_17], %37 {strides = array<i32>} : memref<1x1x256xf32, #tpu.memory_space<vmem>>, vector<1x1x256xf32>,
    return
  }
  func.func @transform_0(%arg0: i32, %arg1: i32) -> (i32, i32, i32) {
    %c0_i32 = arith.constant 0 : i32
    %c0_i32_0 = arith.constant 0 : i32
    return %arg0, %c0_i32, %arg1 : i32, i32, i32
  }
  func.func @transform_1(%arg0: i32, %arg1: i32) -> (i32, i32, i32) {
    %c0_i32 = arith.constant 0 : i32
    %c0_i32_0 = arith.constant 0 : i32
    return %arg0, %c0_i32, %arg1 : i32, i32, i32
  }
  func.func @transform_2(%arg0: i32, %arg1: i32) -> (i32, i32, i32) {
    %c0_i32 = arith.constant 0 : i32
    %c0_i32_0 = arith.constant 0 : i32
    %c0_i32_1 = arith.constant 0 : i32
    return %arg0, %c0_i32, %c0_i32_0 : i32, i32, i32
  }
}

</mosaic_0001>

<llo_original>
// kernel: deeplab_v3_focal_loss.1
$region0: #{deeplab_v3_focal_loss.1}
  #allocation0 [shape = 'u32[]', space=smem, size = 0x4, offset = 0x4, fixed_abs, tag = 'smem constant byte address 0x4 - core index']
  #allocation1 [shape = 'u32[144,128]{1,0:T(1,128)}', space=vmem, size = 0x12000, scoped, tag = 'internal scratch']
  %s0 = inlined_call_operand.vmem [shape: f32[2,4,256], index: 0, kind: input, shape index: {}]
  %s1 = inlined_call_operand.vmem [shape: s32[2,1,256], index: 1, kind: input, shape index: {}]
  %s2 = inlined_call_operand.vmem [shape: f32[2,1,256], index: 2, kind: output, shape index: {}]
  %s3 = sld [smem:[#allocation0]]
  $region45: #{deeplab_v3_focal_loss.1} parent=0
    _
  %s5 = ssub.s32 1, %s3
  %s6 = scalar_select 0, %s5, %s3
  loop: start=0, step=1, limit=4
  $region2: #{deeplab_v3_focal_loss.1} parent=0 // loop_pre_header
    _
  $region3: #{deeplab_v3_focal_loss.1} parent=0 // loop_header
    %s8 = sphi 0, %s12
    %p9 = scmp.ge.s32.totalorder %s8, 4
    %s15 = sphi 0, %s27
    %s16 = sphi 0, %s23
    %s17 = sphi 0, %s15
    %s18 = sphi 0, %s16
    %s19 = sphi 0, %s17
    %s20 = sphi 0, %s18
    %s32 = sphi 0, %s34
    %s35 = sphi 0, %s32
    %s36 = sphi 0, %s35
    %s52 = sphi 0, %s36
    %s60 = sphi 0, %s62
    %s63 = sphi 0, %s60
    %s64 = sphi 0, %s63
    %s80 = sphi 0, %s64
    %s86 = sphi 0, %s88
    %s89 = sphi 0, %s86
    %s90 = sphi 0, %s89
    %s106 = sphi 0, %s90
  $region4: #{deeplab_v3_focal_loss.1} parent=0 // loop_header_branch
    %11 = sbr.rel (%p9) target = $region8
  $region5: #{deeplab_v3_focal_loss.1} parent=0 // loop_body
    %s13 = ssub.s32 %s8, 1
    %s14 = ssub.s32 %s8, 2
    %s21 = sadd.s32 1, %s16
    %p22 = scmp.ge.s32.totalorder %s21, 1
    %s23 = scalar_select %p22, 0, %s21
    %s24 = sadd.s32 1, %s15
    %s25 = scalar_select %p22, %s24, %s15
    %p26 = scmp.ge.s32.totalorder %s25, 2
    %s27 = scalar_select %p26, 0, %s25
    %s28 = ssub.s32 %s15, %s27
    %s29 = ssub.s32 %s16, %s23
    %s30 = sor.u32 %s28, %s29
    %p31 = scmp.eq.s32.totalorder %s30, 0
    %s33 = sadd.s32 %s32, 1
    %s34 = scalar_select %p31, %s32, %s33
    %p37 = pneg %p31
    %p38 = scmp.eq.s32.totalorder %s8, 1
    %p39 = por %p37, %p38
    %p40 = scmp.ne.s32.totalorder %s32, %s35
    %p41 = scmp.eq.s32.totalorder %s8, 0
    %p42 = por %p40, %p41
    %p43 = scmp.ne.s32.totalorder %s32, %s35
    %p44 = scmp.eq.s32.totalorder %s13, 1
    %p45 = por %p43, %p44
    %p46 = scmp.ne.s32.totalorder %s35, %s36
    %p47 = scmp.eq.s32.totalorder %s13, 0
    %p48 = por %p46, %p47
    %p49 = scmp.ne.s32.totalorder %s35, %s36
    %p50 = scmp.eq.s32.totalorder %s14, 1
    %p51 = por %p49, %p50
    %p53 = scmp.ne.s32.totalorder %s36, %s52
    %p54 = scmp.eq.s32.totalorder %s14, 0
    %p55 = por %p53, %p54
    %s56 = ssub.s32 %s15, %s27
    %s57 = ssub.s32 %s16, %s23
    %s58 = sor.u32 %s56, %s57
    %p59 = scmp.eq.s32.totalorder %s58, 0
    %s61 = sadd.s32 %s60, 1
    %s62 = scalar_select %p59, %s60, %s61
    %p65 = pneg %p59
    %p66 = scmp.eq.s32.totalorder %s8, 1
    %p67 = por %p65, %p66
    %p68 = scmp.ne.s32.totalorder %s60, %s63
    %p69 = scmp.eq.s32.totalorder %s8, 0
    %p70 = por %p68, %p69
    %p71 = scmp.ne.s32.totalorder %s60, %s63
    %p72 = scmp.eq.s32.totalorder %s13, 1
    %p73 = por %p71, %p72
    %p74 = scmp.ne.s32.totalorder %s63, %s64
    %p75 = scmp.eq.s32.totalorder %s13, 0
    %p76 = por %p74, %p75
    %p77 = scmp.ne.s32.totalorder %s63, %s64
    %p78 = scmp.eq.s32.totalorder %s14, 1
    %p79 = por %p77, %p78
    %p81 = scmp.ne.s32.totalorder %s64, %s80
    %p82 = scmp.eq.s32.totalorder %s14, 0
    %p83 = por %p81, %p82
    %s84 = ssub.s32 %s15, %s27
    %p85 = scmp.eq.s32.totalorder %s84, 0
    %s87 = sadd.s32 %s86, 1
    %s88 = scalar_select %p85, %s86, %s87
    %p91 = pneg %p85
    %p92 = scmp.eq.s32.totalorder %s8, 1
    %p93 = por %p91, %p92
    %p94 = scmp.ne.s32.totalorder %s86, %s89
    %p95 = scmp.eq.s32.totalorder %s8, 0
    %p96 = por %p94, %p95
    %p97 = scmp.ne.s32.totalorder %s86, %s89
    %p98 = scmp.eq.s32.totalorder %s13, 1
    %p99 = por %p97, %p98
    %p100 = scmp.ne.s32.totalorder %s89, %s90
    %p101 = scmp.eq.s32.totalorder %s13, 0
    %p102 = por %p100, %p101
    %p103 = scmp.ne.s32.totalorder %s89, %s90
    %p104 = scmp.eq.s32.totalorder %s14, 1
    %p105 = por %p103, %p104
    %p107 = scmp.ne.s32.totalorder %s90, %s106
    %p108 = scmp.eq.s32.totalorder %s14, 0
    %p109 = por %p107, %p108
    %p110 = scmp.le.s32.totalorder 1, %s8
    %p111 = scmp.lt.s32.totalorder %s8, 3
    %p112 = pnand %p110, %p111
    %p113 = pneg %p112
    // Predicated region
    $region9: #{deeplab_v3_focal_loss.1} parent=5 // pred_check
      _
    $region10: #{deeplab_v3_focal_loss.1} parent=5 // pred_check_branch
      %115 = sbr.rel (%p112) target = $region12
    $region11: #{deeplab_v3_focal_loss.1} parent=5 // pred_region
      %s116 = ssub.s32 %s8, 1
    $region12: #{deeplab_v3_focal_loss.1} parent=5 // pred_fallthru
      _
    %p117 = scmp.lt.s32.totalorder %s8, 2
    // Predicated region
    $region13: #{deeplab_v3_focal_loss.1} parent=5 // pred_check
      %p118 = pneg %p117
    $region14: #{deeplab_v3_focal_loss.1} parent=5 // pred_check_branch
      %120 = sbr.rel (%p118) target = $region16
    $region15: #{deeplab_v3_focal_loss.1} parent=5 // pred_region
      // Predicated region
      $region17: #{deeplab_v3_focal_loss.1} parent=15 // pred_check
        %p121 = pneg %p42
      $region18: #{deeplab_v3_focal_loss.1} parent=15 // pred_check_branch
        %123 = sbr.rel (%p121) target = $region20
      $region19: #{deeplab_v3_focal_loss.1} parent=15 // pred_region
        %s124 = smul.u32 2, %s16
        %p125 = scmp.lt.s32.totalorder %s15, 1
        %s126 = scalar_select %p125, %s15, 1
        %p127 = scmp.lt.s32.totalorder %s124, 1
        %s128 = scalar_select %p127, %s124, 1
        %s129 = smul.addr %s126, 2
        %s130 = sadd.s32 %s128, %s129
        %s131 = smul.addr %s130, 4
        %s132 = scalar_lea.vmem %s0, %s131
        %s133 = smul.u32 2, %s16
      $region20: #{deeplab_v3_focal_loss.1} parent=15 // pred_fallthru
        _
      // Predicated region
      $region21: #{deeplab_v3_focal_loss.1} parent=15 // pred_check
        %p134 = pneg %p70
      $region22: #{deeplab_v3_focal_loss.1} parent=15 // pred_check_branch
        %136 = sbr.rel (%p134) target = $region24
      $region23: #{deeplab_v3_focal_loss.1} parent=15 // pred_region
        %s137 = smul.u32 2, %s16
        %p138 = scmp.lt.s32.totalorder %s15, 1
        %s139 = scalar_select %p138, %s15, 1
        %p140 = scmp.lt.s32.totalorder %s137, 1
        %s141 = scalar_select %p140, %s137, 1
        %s142 = smul.addr %s139, 2
        %s143 = sadd.s32 %s141, %s142
        %s144 = scalar_lea.vmem %s1, %s143
        %s145 = smul.u32 2, %s16
      $region24: #{deeplab_v3_focal_loss.1} parent=15 // pred_fallthru
        _
    $region16: #{deeplab_v3_focal_loss.1} parent=5 // pred_fallthru
      _
    %p146 = scmp.le.s32.totalorder 1, %s8
    %p147 = scmp.lt.s32.totalorder %s8, 3
    %p148 = pnand %p146, %p147
    %p149 = pneg %p148
    // Predicated region
    $region25: #{deeplab_v3_focal_loss.1} parent=5 // pred_check
      _
    $region26: #{deeplab_v3_focal_loss.1} parent=5 // pred_check_branch
      %151 = sbr.rel (%p148) target = $region28
    $region27: #{deeplab_v3_focal_loss.1} parent=5 // pred_region
      %s152 = ssub.s32 %s8, 1
      %s153 = smul.u32 2, %s18
      %p154 = scmp.lt.s32.totalorder %s17, 1
      %s155 = scalar_select %p154, %s17, 1
      %p156 = scmp.lt.s32.totalorder %s153, 1
      %s157 = scalar_select %p156, %s153, 1
      %s158 = smul.addr %s155, 2
      %s159 = sadd.s32 %s157, %s158
      %s160 = smul.addr %s159, 4
      %s161 = scalar_lea.vmem %s0, %s160
      %p162 = pneg %p48
      %p163 = pneg %p45
      %s164 = smul.u32 2, %s18
      %p165 = scmp.lt.s32.totalorder %s17, 1
      %s166 = scalar_select %p165, %s17, 1
      %p167 = scmp.lt.s32.totalorder %s164, 1
      %s168 = scalar_select %p167, %s164, 1
      %s169 = smul.addr %s166, 2
      %s170 = sadd.s32 %s168, %s169
      %s171 = scalar_lea.vmem %s1, %s170
      %p172 = pneg %p76
      %p173 = pneg %p73
      %p174 = pneg %p102
      %p175 = pneg %p99
      %p176 = scmp.lt.s32.totalorder %s17, 1
      %s177 = scalar_select %p176, %s17, 1
      %s178 = smul.addr %s177, 2
      %s179 = scalar_lea.vmem %s2, %s178
      %s180 = smul.u32 2, %s18
      %p181 = scmp.lt.s32.totalorder %s17, 1
      %s182 = scalar_select %p181, %s17, 1
      %p183 = scmp.lt.s32.totalorder %s180, 1
      %s184 = scalar_select %p183, %s180, 1
      %s185 = smul.addr %s182, 2
      %s186 = sadd.s32 %s184, %s185
      %s187 = smul.addr %s186, 4
      %s188 = scalar_lea.vmem %s0, %s187
      %s189 = smul.u32 2, %s18
      %s190 = smul.u32 2, %s18
      %p191 = scmp.lt.s32.totalorder %s17, 1
      %s192 = scalar_select %p191, %s17, 1
      %p193 = scmp.lt.s32.totalorder %s190, 1
      %s194 = scalar_select %p193, %s190, 1
      %s195 = smul.addr %s192, 2
      %s196 = sadd.s32 %s194, %s195
      %s197 = scalar_lea.vmem %s1, %s196
      %s198 = smul.u32 2, %s18
      %p199 = scmp.lt.s32.totalorder %s17, 1
      %s200 = scalar_select %p199, %s17, 1
      %s201 = smul.addr %s200, 2
      %s202 = scalar_lea.vmem %s2, %s201
      %p203 = scmp.eq.s32.totalorder %s18, 0
      // Predicated region
      $region29: #{deeplab_v3_focal_loss.1} parent=27 // pred_check
        %p204 = pneg %p203
      $region30: #{deeplab_v3_focal_loss.1} parent=27 // pred_check_branch
        %206 = sbr.rel (%p204) target = $region32
      $region31: #{deeplab_v3_focal_loss.1} parent=27 // pred_region
        %v207 = vlaneseq
        %vm208 = vcmp.ge.s32.totalorder %v207, 0
        %vm209 = vcmp.lt.s32.totalorder %v207, 256
        %vm210 = vmand %vm208, %vm209
        %211 = vst.msk [vmem:[%s202] sm:$0x3] %vm210, 0.0
      $region32: #{deeplab_v3_focal_loss.1} parent=27 // pred_fallthru
        _
      %v212 = vld [vmem:[%s188] sm:$0xff]
      %v213 = vld [vmem:[%s197] sm:$0x3]
      %v215 = vcombine.high %v212, %v212
      %vm217 = vcmask 1043456
      %v218 = vsel %vm217, %v212, -inf
      %v219 = vrot.slane %v218, 4
      %v220 = vmax.f32 %v218, %v219
      %v221 = vrot.slane %v220, 2
      %v222 = vmax.f32 %v220, %v221
      %v223 = vrot.slane %v222, 1
      %v224 = vmax.f32 %v222, %v223
      %v225 = vsel %vm217, %v215, -inf
      %v226 = vrot.slane %v225, 4
      %v227 = vmax.f32 %v225, %v226
      %v228 = vrot.slane %v227, 2
      %v229 = vmax.f32 %v227, %v228
      %v230 = vrot.slane %v229, 1
      %v231 = vmax.f32 %v229, %v230
      %v234 = vcombine.low %v224, %v231
      %v236 = vsub.f32 %v212, %v234
      %v237 = vmul.f32 %v236, 1.442695
      %v238 = vpow.pop %v237
      %v240 = vcombine.high %v238, %v238
      %v242 = vsel %vm217, %v238, 0.0
      %v243 = vrot.slane %v242, 4
      %v244 = vadd.f32 %v242, %v243
      %v245 = vrot.slane %v244, 2
      %v246 = vadd.f32 %v244, %v245
      %v247 = vrot.slane %v246, 1
      %v248 = vadd.f32 %v246, %v247
      %v249 = vsel %vm217, %v240, 0.0
      %v250 = vrot.slane %v249, 4
      %v251 = vadd.f32 %v249, %v250
      %v252 = vrot.slane %v251, 2
      %v253 = vadd.f32 %v251, %v252
      %v254 = vrot.slane %v253, 1
      %v255 = vadd.f32 %v253, %v254
      %v256 = vlog2.pop %v248
      %v257 = vmul.f32 %v256, 0.6931472
      %v258 = vlog2.pop %v255
      %v259 = vmul.f32 %v258, 0.6931472
      %v260 = vadd.f32 %v224, %v257
      %v261 = vadd.f32 %v231, %v259
      %v262 = vlaneseq
      %v263 = vshrl.u32 %v262, 7
      %v264 = vlaneseq
      %v265 = vshrl.u32 %v264, 7
      %v266 = vsub.s32 0, %v265
      %v267 = vrot.slane %v213, %v266
      %v268 = vlaneseq
      %v269 = vshrl.u32 %v268, 7
      %v270 = vsub.s32 1, %v269
      %v271 = vrot.slane %v213, %v270
      %vm272 = vcmp.eq.s32.totalorder %v263, %v267
      %vm273 = vcmp.eq.s32.totalorder %v263, %v271
      %v274 = vsel %vm272, %v212, 0.0
      %v275 = vsel %vm273, %v215, 0.0
      %v276 = vsel %vm217, %v274, 0.0
      %v277 = vrot.slane %v276, 4
      %v278 = vadd.f32 %v276, %v277
      %v279 = vrot.slane %v278, 2
      %v280 = vadd.f32 %v278, %v279
      %v281 = vrot.slane %v280, 1
      %v282 = vadd.f32 %v280, %v281
      %v283 = vsel %vm217, %v275, 0.0
      %v284 = vrot.slane %v283, 4
      %v285 = vadd.f32 %v283, %v284
      %v286 = vrot.slane %v285, 2
      %v287 = vadd.f32 %v285, %v286
      %v288 = vrot.slane %v287, 1
      %v289 = vadd.f32 %v287, %v288
      %vm290 = vcmp.ne.s32.totalorder %v213, 255
      %v291 = vsub.f32 %v260, %v282
      %v292 = vsub.f32 %v261, %v289
      %v293 = vld [vmem:[%s202] sm:$0x3]
      %v296 = vcombine.low %v291, %v292
      %v298 = vunpack.c.l.s4 1966171168
      %v299 = vunpack.c.0.s8 %v298
      %v300 = vlaneseq
      %v301 = vshrl.u32 %v300, 7
      %v302 = vsub.s32 %v299, %v301
      %v303 = vrot.slane %v296, %v302
      %v305 = vunpack.c.l.s4 1966171168
      %v306 = vunpack.c.0.s8 %v305
      %v307 = vlaneseq
      %v308 = vshrl.u32 %v307, 7
      %v309 = vsub.s32 %v306, %v308
      %v310 = vrot.slane %v303, %v309
      %v312 = vsel %vm290, %v310, 0.0
      %v313 = vadd.f32 %v293, %v312
      %v314 = vlaneseq
      %vm315 = vcmp.ge.s32.totalorder %v314, 0
      %vm316 = vcmp.lt.s32.totalorder %v314, 256
      %vm317 = vmand %vm315, %vm316
      %318 = vst.msk [vmem:[%s202] sm:$0x3] %vm317, %v313
      %p319 = scmp.lt.s32.totalorder %s17, 1
      %s320 = scalar_select %p319, %s17, 1
      %s321 = smul.addr %s320, 2
      %s322 = scalar_lea.vmem %s2, %s321
      // Predicated region
      $region33: #{deeplab_v3_focal_loss.1} parent=27 // pred_check
        %p323 = pneg %p99
      $region34: #{deeplab_v3_focal_loss.1} parent=27 // pred_check_branch
        %325 = sbr.rel (%p323) target = $region36
      $region35: #{deeplab_v3_focal_loss.1} parent=27 // pred_region
        _
      $region36: #{deeplab_v3_focal_loss.1} parent=27 // pred_fallthru
        _
    $region28: #{deeplab_v3_focal_loss.1} parent=5 // pred_fallthru
      _
    %p326 = scmp.le.s32.totalorder 2, %s8
    // Predicated region
    $region37: #{deeplab_v3_focal_loss.1} parent=5 // pred_check
      %p327 = pneg %p326
    $region38: #{deeplab_v3_focal_loss.1} parent=5 // pred_check_branch
      %329 = sbr.rel (%p327) target = $region40
    $region39: #{deeplab_v3_focal_loss.1} parent=5 // pred_region
      %s330 = ssub.s32 %s8, 2
      // Predicated region
      $region41: #{deeplab_v3_focal_loss.1} parent=39 // pred_check
        %p331 = pneg %p105
      $region42: #{deeplab_v3_focal_loss.1} parent=39 // pred_check_branch
        %333 = sbr.rel (%p331) target = $region44
      $region43: #{deeplab_v3_focal_loss.1} parent=39 // pred_region
        %p334 = scmp.lt.s32.totalorder %s19, 1
        %s335 = scalar_select %p334, %s19, 1
        %s336 = smul.addr %s335, 2
        %s337 = scalar_lea.vmem %s2, %s336
      $region44: #{deeplab_v3_focal_loss.1} parent=39 // pred_fallthru
        _
    $region40: #{deeplab_v3_focal_loss.1} parent=5 // pred_fallthru
      _
  $region6: #{deeplab_v3_focal_loss.1} parent=0 // loop_footer
    %s12 = sadd.s32 1, %s8
  $region7: #{deeplab_v3_focal_loss.1} parent=0 // loop_footer_branch
    %7 = sbr.rel target = $region3
  $region8: #{deeplab_v3_focal_loss.1} parent=0 // loop_exit
    _

</llo_original>
